<compile_context>
chip_gen: v7x
topology: tpu7x:2x2x1
jax: 0.10.0
libtpu: 0.0.40
codegen_flags: <defaults>
</compile_context>

<pallas_src>
import functools

import jax
import jax.numpy as jnp
from jax import lax
from jax.experimental import pallas as pl
from jax.experimental.pallas import tpu as pltpu

MATMUL_DTYPE = jnp.bfloat16      # MXU operands (f32 accumulation)
NLIN_OUT_DTYPE = jnp.bfloat16    # nlin kernel writeback dtype (HBM-bound kernel)
BN_EPS = 1e-5


def _round_up(v, m):
    return ((v + m - 1) // m) * m


@functools.lru_cache(maxsize=1)
def _tpu_vmem_capacity_bytes() -> int:
    try:
        return int(pltpu.get_tpu_info().vmem_capacity_bytes)
    except Exception:
        return 128 * 1024 * 1024


@functools.lru_cache(maxsize=1)
def _vmem_limit_bytes() -> int:
    # Above the 16/32 MiB scoped defaults, below physical capacity with
    # headroom for Mosaic internal scratch (v7x 64 MiB/TC -> 48; v5e/v6e -> 64).
    cap = _tpu_vmem_capacity_bytes()
    return min(64 * 1024 * 1024, (cap * 3) // 4)


@functools.lru_cache(maxsize=1)
def _block_byte_budget() -> int:
    # Generation-aware per-block byte target: big enough to amortise the
    # ~0.35 us per-grid-step overhead (>=85% of the HBM roofline), small enough
    # that double-buffered in/out blocks + f32 temporaries fit the VMEM limit.
    cap = _tpu_vmem_capacity_bytes()
    if cap <= 96 * 1024 * 1024:        # v7x (64 MiB / TC)
        return 3 * 1024 * 1024
    return 6 * 1024 * 1024             # v5e / v6e (128 MiB)


def _column_tile(n, rows, bytes_per_col_row):
    """Largest multiple-of-128 column tile with rows*tile*bytes <= budget."""
    budget = _block_byte_budget()
    tile = (budget // max(1, rows * bytes_per_col_row)) // 128 * 128
    tile = max(tile, 512)
    return n if tile >= n else tile


# ----------------------------------------------------------------------------
# Pallas kernel 1: ExternalNlinCore
#   y   = W_block @ x_packed   (single fused MXU matmul, bf16 -> f32 acc)
#   amp = y_re^2 + y_im^2      (f32, VPU)
#   out = amp * y              (cast to bf16 on store)
# ----------------------------------------------------------------------------
def _nlin_core_kernel(x_ref, w_ref, o_ref):
    # x_ref: (2*Cp, tile_n) bf16, rows packed [re(ch 0..Cp-1) ; im(ch 0..Cp-1)]
    # w_ref: (2*Cp, 2*Cp)   bf16, block-combined pre_nlin_mix weight (VMEM resident)
    # o_ref: (2, Cp, tile_n) NLIN_OUT_DTYPE, o_ref[0] = re, o_ref[1] = im
    y = jnp.dot(w_ref[...], x_ref[...], preferred_element_type=jnp.float32)
    cp = y.shape[0] // 2
    yre = y[:cp, :]                    # Cp is a multiple of 8 -> tile-aligned slices
    yim = y[cp:, :]
    amp = yre * yre + yim * yim        # |y|^2 in f32
    o_ref[0, :, :] = (amp * yre).astype(o_ref.dtype)
    o_ref[1, :, :] = (amp * yim).astype(o_ref.dtype)


def nlin_core_pallas(x_t, w_t_block, *, tile_n=None):
    """x_t: (2*Cp, N) bf16 packed [re;im].  w_t_block: (2*Cp, 2*Cp) bf16.

    Returns (2, Cp, N) NLIN_OUT_DTYPE ([0]=re, [1]=im)."""
    two_cp, n = x_t.shape
    cp = two_cp // 2
    if tile_n is None:
        # Byte-budgeted, generation-aware column tile (review item: tiles were
        # far too small in bytes with a fixed 2048-column tile).
        tile_n = _column_tile(n, two_cp, 4)
    grid = (pl.cdiv(n, tile_n),)
    return pl.pallas_call(
        _nlin_core_kernel,
        out_shape=jax.ShapeDtypeStruct((2, cp, n), NLIN_OUT_DTYPE),
        grid_spec=pltpu.PrefetchScalarGridSpec(
            num_scalar_prefetch=0,
            grid=grid,
            in_specs=[
                # TODO(synk): on v7x, if the profile shows exposed input DMA,
                # add pipeline_mode=pl.Buffered(3) on this spec.
                pl.BlockSpec((two_cp, tile_n), lambda i: (0, i)),   # activations
                pl.BlockSpec((two_cp, two_cp), lambda i: (0, 0)),   # weight, resident
            ],
            out_specs=pl.BlockSpec((2, cp, tile_n), lambda i: (0, 0, i)),
        ),
        compiler_params=pltpu.CompilerParams(
            dimension_semantics=("parallel",),
            vmem_limit_bytes=_vmem_limit_bytes(),
        ),
    )(x_t, w_t_block)


# ----------------------------------------------------------------------------
# Pallas kernel 2: BatchNorm1d(n_channels), training-mode forward
# (biased batch statistics over all (N, L) samples, per channel).
# Input is (C, N): channels on sublanes, samples on lanes -> lane-dense.
# Small N: one fused pass.  Large N: two N-tiled passes (stats + normalize).
# ----------------------------------------------------------------------------
def _bn_fused_kernel(x_ref, gamma_ref, beta_ref, o_ref, *, eps):
    x = x_ref[...]                                     # (tile_c, N) f32
    inv_n = 1.0 / x.shape[1]
    mean = jnp.sum(x, axis=1, keepdims=True) * inv_n
    xc = x - mean
    var = jnp.sum(xc * xc, axis=1, keepdims=True) * inv_n
    inv = lax.rsqrt(var + eps)
    o_ref[...] = xc * (inv * gamma_ref[...]) + beta_ref[...]


def _bn_stats_kernel(x_ref, mean_ref, var_ref, sum_sc, sq_sc, *, n_total, tile_n):
    ni = pl.program_id(1)

    @pl.when(ni == 0)
    def _():
        sum_sc[...] = jnp.zeros_like(sum_sc)
        sq_sc[...] = jnp.zeros_like(sq_sc)

    x = x_ref[...]                                     # (tile_c, tile_n) f32
    col = ni * tile_n + lax.broadcasted_iota(jnp.int32, x.shape, 1)
    x = jnp.where(col < n_total, x, 0.0)               # mask ragged last tile
    sum_sc[...] += jnp.sum(x, axis=1, keepdims=True)
    sq_sc[...] += jnp.sum(x * x, axis=1, keepdims=True)

    @pl.when(ni == pl.num_programs(1) - 1)
    def _():
        inv_n = 1.0 / n_total
        mean = sum_sc[...] * inv_n
        mean_ref[...] = mean
        var_ref[...] = sq_sc[...] * inv_n - mean * mean


def _bn_apply_kernel(x_ref, scale_ref, shift_ref, o_ref):
    o_ref[...] = x_ref[...] * scale_ref[...] + shift_ref[...]


def batchnorm1d_pallas(x_cn, gamma, beta, *, eps=BN_EPS, tile_n=None):
    """x_cn: (C, N) float32.  Returns (C, N) float32 (training-mode BN)."""
    c, n = x_cn.shape
    tile_c = c if c <= 8 else 8
    c_grid = pl.cdiv(c, tile_c)
    if tile_n is None:
        tile_n = _column_tile(n, tile_c, 8)            # f32 in + f32 out per element
    gamma2 = gamma.reshape(c, 1).astype(jnp.float32)
    beta2 = beta.reshape(c, 1).astype(jnp.float32)

    if tile_n >= n:
        # Full channel row fits the byte budget: single fused pass (x read once).
        return pl.pallas_call(
            functools.partial(_bn_fused_kernel, eps=eps),
            out_shape=jax.ShapeDtypeStruct((c, n), jnp.float32),
            grid_spec=pltpu.PrefetchScalarGridSpec(
                num_scalar_prefetch=0,
                grid=(c_grid,),
                in_specs=[
                    pl.BlockSpec((tile_c, n), lambda i: (i, 0)),
                    pl.BlockSpec((tile_c, 1), lambda i: (i, 0)),
                    pl.BlockSpec((tile_c, 1), lambda i: (i, 0)),
                ],
                out_specs=pl.BlockSpec((tile_c, n), lambda i: (i, 0)),
            ),
            compiler_params=pltpu.CompilerParams(
                dimension_semantics=("parallel",),
                vmem_limit_bytes=_vmem_limit_bytes(),
            ),
        )(x_cn, gamma2, beta2)

    # --- Large N: two-pass, N-tiled scheme (bounds VMEM on v7x's 64 MiB) -----
    n_grid = pl.cdiv(n, tile_n)

    # Pass 1: per-channel sum / sum-of-squares accumulated in VMEM scratch.
    mean, var = pl.pallas_call(
        functools.partial(_bn_stats_kernel, n_total=n, tile_n=tile_n),
        out_shape=(jax.ShapeDtypeStruct((c, 1), jnp.float32),
                   jax.ShapeDtypeStruct((c, 1), jnp.float32)),
        grid_spec=pltpu.PrefetchScalarGridSpec(
            num_scalar_prefetch=0,
            grid=(c_grid, n_grid),
            in_specs=[pl.BlockSpec((tile_c, tile_n), lambda ci, ni: (ci, ni))],
            out_specs=(pl.BlockSpec((tile_c, 1), lambda ci, ni: (ci, 0)),
                       pl.BlockSpec((tile_c, 1), lambda ci, ni: (ci, 0))),
            scratch_shapes=[pltpu.VMEM((tile_c, 1), jnp.float32),
                            pltpu.VMEM((tile_c, 1), jnp.float32)],
        ),
        compiler_params=pltpu.CompilerParams(
            dimension_semantics=("parallel", "arbitrary"),
            vmem_limit_bytes=_vmem_limit_bytes(),
        ),
    )(x_cn)

    # Tiny per-channel affine fold (C elements, plain JAX glue).
    scale = gamma2 * lax.rsqrt(var + eps)
    shift = beta2 - mean * scale

    # Pass 2: normalize. Both axes "parallel" -> shards across v7x's two TCs.
    return pl.pallas_call(
        _bn_apply_kernel,
        out_shape=jax.ShapeDtypeStruct((c, n), jnp.float32),
        grid_spec=pltpu.PrefetchScalarGridSpec(
            num_scalar_prefetch=0,
            grid=(c_grid, n_grid),
            in_specs=[
                pl.BlockSpec((tile_c, tile_n), lambda ci, ni: (ci, ni)),
                pl.BlockSpec((tile_c, 1), lambda ci, ni: (ci, 0)),
                pl.BlockSpec((tile_c, 1), lambda ci, ni: (ci, 0)),
            ],
            out_specs=pl.BlockSpec((tile_c, tile_n), lambda ci, ni: (ci, ni)),
        ),
        compiler_params=pltpu.CompilerParams(
            dimension_semantics=("parallel", "parallel"),
            vmem_limit_bytes=_vmem_limit_bytes(),
        ),
    )(x_cn, scale, shift)


# ----------------------------------------------------------------------------
# Parameter init + one-time weight preparation
# ----------------------------------------------------------------------------
def _prepare_nlin_weight(w, n_channels, dtype):
    """PyTorch Linear weight (2C, 2C) (out, in), interleaved (re, im) features
    -> channel-padded block weight W_t with  y_t = W_t @ x_t  in packed
    channel-major [re ; im] layout (channels padded to a multiple of 8 so the
    kernel's re/im split lands on an (8,128) sublane-tile boundary)."""
    c = n_channels
    cp = _round_up(c, 8)
    w4 = w.reshape(c, 2, c, 2)                                  # (oc, ok, ic, ik)
    w4 = jnp.pad(w4, ((0, cp - c), (0, 0), (0, cp - c), (0, 0)))
    return w4.transpose(1, 0, 3, 2).reshape(2 * cp, 2 * cp).astype(dtype)


def init_params(key, in_seq, out_seq, n_channels):
    k1, k2, k3 = jax.random.split(key, 3)
    nlin_w = (jax.random.normal(k2, (2 * n_channels, 2 * n_channels), jnp.float32)
              / jnp.sqrt(2 * n_channels))
    return {
        # TODO(synk): TxaFilterEnsembleTorch source not provided; modeled as a
        # per-channel linear sequence filter (in_seq -> out_seq) shared by re/im.
        "txa_w": (jax.random.normal(k1, (n_channels, out_seq, in_seq), jnp.float32)
                  / jnp.sqrt(in_seq)),
        # ExternalNlinCore.pre_nlin_mix: nn.Linear(2C, 2C, bias=False), weight (out, in)
        "nlin_w": nlin_w,
        # Pre-combined, de-interleaved, channel-padded bf16 block weight.
        "nlin_w_t_block": _prepare_nlin_weight(nlin_w, n_channels, MATMUL_DTYPE),
        # TODO(synk): RxaFilterEnsembleTorch source not provided; modeled as a
        # per-channel linear filter mapping (out_seq, 2) -> out_seq, real output.
        "rxa_w": (jax.random.normal(k3, (n_channels, out_seq, out_seq, 2), jnp.float32)
                  / jnp.sqrt(2 * out_seq)),
        # BatchNorm1d(n_channels) affine params (PyTorch defaults)
        "bn_gamma": jnp.ones((n_channels,), jnp.float32),
        "bn_beta": jnp.zeros((n_channels,), jnp.float32),
    }


# ----------------------------------------------------------------------------
# Full LinearExternal forward (JAX glue + Pallas hot paths)
# ----------------------------------------------------------------------------
def linear_external_forward(x, params):
    """x: (B, in_seq, C, 2) float32  ->  (B, C, out_seq) float32."""
    b, _, c, _ = x.shape
    cp = _round_up(c, 8)

    # --- Txa filter ensemble (glue; see TODO in init) — packed transposed layout
    filt = jnp.einsum("cts,bsck->kcbt", params["txa_w"], x)          # (2, C, B, T)
    t = filt.shape[3]
    if cp != c:
        # zero-pad channels so the kernel's re/im halves are sublane aligned
        filt = jnp.pad(filt, ((0, 0), (0, cp - c), (0, 0), (0, 0)))
    # TODO(synk): verify in HLO that this cast fuses into the einsum epilogue;
    # otherwise accept f32 here and cast inside the kernel.
    x_t = filt.reshape(2 * cp, b * t).astype(MATMUL_DTYPE)           # (2Cp, B*T)

    # --- ExternalNlinCore (Pallas kernel) ------------------------------------
    y3 = nlin_core_pallas(x_t, params["nlin_w_t_block"])             # (2, Cp, B*T)

    # --- Rxa filter ensemble (glue; see TODO in init) — emit (C, B, T) directly
    nlin = y3.reshape(2, cp, b, t)[:, :c]                            # (2, C, B, T)
    rxa_out = jnp.einsum("ctuk,kcbu->cbt", params["rxa_w"], nlin)    # (C, B, T) f32

    # --- BatchNorm1d (Pallas, training-mode batch statistics) ----------------
    # TODO(synk): running_mean / running_var are not tracked (PyTorch eval mode
    # with stored statistics is not reproducible).
    bn = batchnorm1d_pallas(rxa_out.reshape(c, b * t),
                            params["bn_gamma"], params["bn_beta"])

    # TODO(synk): if out_seq % 128 == 0, fold this transpose into the BN
    # normalize pass's out_spec ((1, tile_c, T) blocks) instead of XLA transpose.
    return bn.reshape(c, b, t).transpose(1, 0, 2)


# ----------------------------------------------------------------------------
# Pure-JAX reference in the original PyTorch layout (interleaved features,
# nn.Linear as x @ W.T). bf16 cast points match the kernel so tolerances stay tight.
# ----------------------------------------------------------------------------
def reference_forward(x, params, eps=BN_EPS):
    b, s, c, _ = x.shape
    filt = jnp.einsum("cts,bsck->btck", params["txa_w"], x)          # (B, T, C, 2)
    t = filt.shape[1]
    x_flat = filt.reshape(b * t, 2 * c).astype(MATMUL_DTYPE)
    w = params["nlin_w"].astype(MATMUL_DTYPE)
    mixed = jnp.dot(x_flat, w.T, preferred_element_type=jnp.float32)
    mixed = mixed.reshape(b, t, c, 2)
    amp = mixed[..., 0] ** 2 + mixed[..., 1] ** 2
    nlin = (amp[..., None] * mixed).astype(NLIN_OUT_DTYPE).astype(jnp.float32)
    rxa = jnp.einsum("ctuk,buck->bct", params["rxa_w"], nlin)        # (B, C, T)
    mean = rxa.mean(axis=(0, 2), keepdims=True)
    var = ((rxa - mean) ** 2).mean(axis=(0, 2), keepdims=True)
    out = (rxa - mean) * lax.rsqrt(var + eps)
    return out * params["bn_gamma"][None, :, None] + params["bn_beta"][None, :, None]


if __name__ == "__main__":
    B, IN_SEQ, OUT_SEQ, C = 2, 16, 8, 4

    key = jax.random.PRNGKey(0)
    k_x, k_p, k_bn, k_nl = jax.random.split(key, 4)
    x = jax.random.normal(k_x, (B, IN_SEQ, C, 2), jnp.float32)
    params = init_params(k_p, IN_SEQ, OUT_SEQ, C)

    fwd = jax.jit(linear_external_forward)
    out = jax.block_until_ready(fwd(x, params))
    assert out.shape == (B, C, OUT_SEQ), out.shape
    assert bool(jnp.all(jnp.isfinite(out)))

    ref = reference_forward(x, params)
    assert jnp.allclose(out, ref, rtol=5e-2, atol=5e-2), \
        float(jnp.max(jnp.abs(out - ref)))

    # Exercise the large-N code paths the tiny demo forward does not hit.
    # (a) N-tiled two-pass BatchNorm with a ragged last column tile.
    xb = jax.random.normal(k_bn, (5, 400), jnp.float32)
    g = jnp.linspace(0.5, 1.5, 5).astype(jnp.float32)
    be = jnp.linspace(-1.0, 1.0, 5).astype(jnp.float32)
    bn_out = jax.block_until_ready(batchnorm1d_pallas(xb, g, be, tile_n=128))
    mu = xb.mean(axis=1, keepdims=True)
    va = ((xb - mu) ** 2).mean(axis=1, keepdims=True)
    bn_ref = (xb - mu) * lax.rsqrt(va + BN_EPS) * g[:, None] + be[:, None]
    assert jnp.allclose(bn_out, bn_ref, rtol=1e-3, atol=1e-3)

    # (b) column-tiled nlin kernel with a ragged last column tile.
    cp = 8
    xt = jax.random.normal(k_nl, (2 * cp, 400), jnp.float32).astype(MATMUL_DTYPE)
    wt = params["nlin_w_t_block"]
    y3 = jax.block_until_ready(nlin_core_pallas(xt, wt, tile_n=128))
    yf = jnp.dot(wt.astype(jnp.float32), xt.astype(jnp.float32))
    ar = yf[:cp] ** 2 + yf[cp:] ** 2
    y_ref = jnp.stack([ar * yf[:cp], ar * yf[cp:]], axis=0)
    assert jnp.allclose(y3.astype(jnp.float32), y_ref, rtol=2e-2, atol=2e-2)

    print("KERNEL_OK")
</pallas_src>

<mosaic_0001>
module attributes {stable_mosaic.version = 11 : i64} {
  func.func @_nlin_core_kernel(%arg0: i32, %arg1: memref<16x16xbf16, #tpu.memory_space<vmem>>, %arg2: memref<16x16xbf16, #tpu.memory_space<vmem>>, %arg3: memref<2x8x16xbf16, #tpu.memory_space<vmem>>) attributes {dimension_semantics = [#tpu.dimension_semantics<parallel>], iteration_bounds = array<i64: 1>, scalar_prefetch = 0 : i64, scratch_operands = 0 : i64, tpu.core_type = #tpu.core_type<tc>, window_params = [{transform_indices = @transform_0, window_bounds = array<i64: 16, 16>}, {pipeline_mode = #tpu.pipeline_mode<synchronous>, transform_indices = @transform_1, window_bounds = array<i64: 16, 16>}, {transform_indices = @transform_2, window_bounds = array<i64: 2, 8, 16>}]} {
    %c0 = arith.constant 0 : index
    %c0_0 = arith.constant 0 : index
    %0 = vector.load %arg2[%c0, %c0_0] : memref<16x16xbf16, #tpu.memory_space<vmem>>, vector<16x16xbf16>
    %c0_1 = arith.constant 0 : index
    %c0_2 = arith.constant 0 : index
    %1 = vector.load %arg1[%c0_1, %c0_2] : memref<16x16xbf16, #tpu.memory_space<vmem>>, vector<16x16xbf16>
    %cst = arith.constant dense<0.000000e+00> : vector<16x16xf32>
    %2 = tpu.matmul %0, %1, %cst {dimension_numbers = #tpu.dot_dimension_numbers<[1], [0], [0], [1], [0, 0, 1, 1], [], []>} : vector<16x16xbf16>, vector<16x16xbf16>, vector<16x16xf32> -> vector<16x16xf32>
    %3 = vector.extract_strided_slice %2 {offsets = [0, 0], sizes = [8, 16], strides = [1, 1]} : vector<16x16xf32> to vector<8x16xf32>
    %4 = vector.extract_strided_slice %2 {offsets = [8, 0], sizes = [8, 16], strides = [1, 1]} : vector<16x16xf32> to vector<8x16xf32>
    %5 = arith.mulf %3, %3 : vector<8x16xf32>
    %6 = arith.mulf %4, %4 : vector<8x16xf32>
    %7 = arith.addf %5, %6 : vector<8x16xf32>
    %8 = arith.mulf %7, %3 : vector<8x16xf32>
    %9 = arith.truncf %8 : vector<8x16xf32> to vector<8x16xbf16>
    %c0_3 = arith.constant 0 : index
    %c0_4 = arith.constant 0 : index
    %c0_5 = arith.constant 0 : index
    %10 = vector.load %arg3[%c0_3, %c0_4, %c0_5] : memref<2x8x16xbf16, #tpu.memory_space<vmem>>, vector<1x8x16xbf16>
    %11 = vector.shape_cast %10 : vector<1x8x16xbf16> to vector<8x16xbf16>
    %12 = vector.shape_cast %9 : vector<8x16xbf16> to vector<1x8x16xbf16>
    tpu.vector_store %arg3[%c0_3, %c0_4, %c0_5], %12 {strides = array<i32>} : memref<2x8x16xbf16, #tpu.memory_space<vmem>>, vector<1x8x16xbf16>,
    %13 = arith.mulf %7, %4 : vector<8x16xf32>
    %14 = arith.truncf %13 : vector<8x16xf32> to vector<8x16xbf16>
    %c1 = arith.constant 1 : index
    %c0_6 = arith.constant 0 : index
    %c0_7 = arith.constant 0 : index
    %15 = vector.load %arg3[%c1, %c0_6, %c0_7] : memref<2x8x16xbf16, #tpu.memory_space<vmem>>, vector<1x8x16xbf16>
    %16 = vector.shape_cast %15 : vector<1x8x16xbf16> to vector<8x16xbf16>
    %17 = vector.shape_cast %14 : vector<8x16xbf16> to vector<1x8x16xbf16>
    tpu.vector_store %arg3[%c1, %c0_6, %c0_7], %17 {strides = array<i32>} : memref<2x8x16xbf16, #tpu.memory_space<vmem>>, vector<1x8x16xbf16>,
    return
  }
  func.func @transform_0(%arg0: i32) -> (i32, i32) {
    %c0_i32 = arith.constant 0 : i32
    %c0_i32_0 = arith.constant 0 : i32
    return %c0_i32, %arg0 : i32, i32
  }
  func.func @transform_1(%arg0: i32) -> (i32, i32) {
    %c0_i32 = arith.constant 0 : i32
    %c0_i32_0 = arith.constant 0 : i32
    %c0_i32_1 = arith.constant 0 : i32
    return %c0_i32, %c0_i32_0 : i32, i32
  }
  func.func @transform_2(%arg0: i32) -> (i32, i32, i32) {
    %c0_i32 = arith.constant 0 : i32
    %c0_i32_0 = arith.constant 0 : i32
    %c0_i32_1 = arith.constant 0 : i32
    return %c0_i32, %c0_i32_0, %arg0 : i32, i32, i32
  }
}

module attributes {stable_mosaic.version = 11 : i64} {
  func.func @_bn_fused_kernel(%arg0: i32, %arg1: memref<4x16xf32, #tpu.memory_space<vmem>>, %arg2: memref<4x1xf32, #tpu.memory_space<vmem>>, %arg3: memref<4x1xf32, #tpu.memory_space<vmem>>, %arg4: memref<4x16xf32, #tpu.memory_space<vmem>>) attributes {dimension_semantics = [#tpu.dimension_semantics<parallel>], iteration_bounds = array<i64: 1>, scalar_prefetch = 0 : i64, scratch_operands = 0 : i64, tpu.core_type = #tpu.core_type<tc>, window_params = [{transform_indices = @transform_0, window_bounds = array<i64: 4, 16>}, {transform_indices = @transform_1, window_bounds = array<i64: 4, 1>}, {transform_indices = @transform_2, window_bounds = array<i64: 4, 1>}, {transform_indices = @transform_3, window_bounds = array<i64: 4, 16>}]} {
    %c0 = arith.constant 0 : index
    %c0_0 = arith.constant 0 : index
    %0 = vector.load %arg1[%c0, %c0_0] : memref<4x16xf32, #tpu.memory_space<vmem>>, vector<4x16xf32>
    %cst = arith.constant dense<0.000000e+00> : vector<4xf32>
    %1 = vector.multi_reduction <add>, %0, %cst [1] : vector<4x16xf32> to vector<4xf32>
    %2 = vector.shape_cast %1 : vector<4xf32> to vector<4x1xf32>
    %cst_1 = arith.constant 6.250000e-02 : f32
    %3 = vector.broadcast %cst_1 : f32 to vector<4x1xf32>
    %4 = arith.mulf %2, %3 : vector<4x1xf32>
    %5 = vector.broadcast %4 : vector<4x1xf32> to vector<4x16xf32>
    %6 = arith.subf %0, %5 : vector<4x16xf32>
    %7 = arith.mulf %6, %6 : vector<4x16xf32>
    %cst_2 = arith.constant dense<0.000000e+00> : vector<4xf32>
    %8 = vector.multi_reduction <add>, %7, %cst_2 [1] : vector<4x16xf32> to vector<4xf32>
    %9 = vector.shape_cast %8 : vector<4xf32> to vector<4x1xf32>
    %cst_3 = arith.constant 6.250000e-02 : f32
    %10 = vector.broadcast %cst_3 : f32 to vector<4x1xf32>
    %11 = arith.mulf %9, %10 : vector<4x1xf32>
    %cst_4 = arith.constant 9.99999974E-6 : f32
    %12 = vector.broadcast %cst_4 : f32 to vector<4x1xf32>
    %13 = arith.addf %11, %12 : vector<4x1xf32>
    %14 = math.rsqrt %13 : vector<4x1xf32>
    %c0_5 = arith.constant 0 : index
    %c0_6 = arith.constant 0 : index
    %15 = vector.load %arg2[%c0_5, %c0_6] : memref<4x1xf32, #tpu.memory_space<vmem>>, vector<4x1xf32>
    %16 = arith.mulf %14, %15 : vector<4x1xf32>
    %17 = vector.broadcast %16 : vector<4x1xf32> to vector<4x16xf32>
    %18 = arith.mulf %6, %17 : vector<4x16xf32>
    %c0_7 = arith.constant 0 : index
    %c0_8 = arith.constant 0 : index
    %19 = vector.load %arg3[%c0_7, %c0_8] : memref<4x1xf32, #tpu.memory_space<vmem>>, vector<4x1xf32>
    %20 = vector.broadcast %19 : vector<4x1xf32> to vector<4x16xf32>
    %21 = arith.addf %18, %20 : vector<4x16xf32>
    %c0_9 = arith.constant 0 : index
    %c0_10 = arith.constant 0 : index
    %22 = vector.load %arg4[%c0_9, %c0_10] : memref<4x16xf32, #tpu.memory_space<vmem>>, vector<4x16xf32>
    tpu.vector_store %arg4[%c0_9, %c0_10], %21 {strides = array<i32>} : memref<4x16xf32, #tpu.memory_space<vmem>>, vector<4x16xf32>,
    return
  }
  func.func @transform_0(%arg0: i32) -> (i32, i32) {
    %c0_i32 = arith.constant 0 : i32
    %c0_i32_0 = arith.constant 0 : i32
    return %arg0, %c0_i32 : i32, i32
  }
  func.func @transform_1(%arg0: i32) -> (i32, i32) {
    %c0_i32 = arith.constant 0 : i32
    %c0_i32_0 = arith.constant 0 : i32
    return %arg0, %c0_i32 : i32, i32
  }
  func.func @transform_2(%arg0: i32) -> (i32, i32) {
    %c0_i32 = arith.constant 0 : i32
    %c0_i32_0 = arith.constant 0 : i32
    return %arg0, %c0_i32 : i32, i32
  }
  func.func @transform_3(%arg0: i32) -> (i32, i32) {
    %c0_i32 = arith.constant 0 : i32
    %c0_i32_0 = arith.constant 0 : i32
    return %arg0, %c0_i32 : i32, i32
  }
}

</mosaic_0001>

<llo_original>
// kernel: linear_external_forward.2
$region0: #{linear_external_forward.2}
  #allocation0 [shape = 'u32[]', space=smem, size = 0x4, offset = 0x4, fixed_abs, tag = 'smem constant byte address 0x4 - core index']
  #allocation1 [shape = 'u32[144,128]{1,0:T(1,128)}', space=vmem, size = 0x12000, scoped, tag = 'internal scratch']
  %s0 = inlined_call_operand.hbm [shape: bf16[16,16], index: 0, kind: input, shape index: {}]
  %s1 = inlined_call_operand.hbm [shape: bf16[16,16], index: 1, kind: input, shape index: {}]
  %s2 = inlined_call_operand.hbm [shape: bf16[2,8,16], index: 2, kind: output, shape index: {}]
  %s3 = sld [smem:[#allocation0]]
  $region26: #{linear_external_forward.2} parent=0
    _
  %s5 = ssub.s32 1, %s3
  %s6 = scalar_select 0, %s5, %s3
  $region1: #{linear_external_forward.2} parent=0
    #allocation2 [shape = 'u8[4096]{0}', space=vmem, size = 0x1000, scoped, tag = 'input window, operand 0, single buffered']
    #allocation3 [shape = 's32[1]{0}', space=sflag, size = 0x4, scoped, tag = 'scoped memory for linear_external_forward.2']
    #allocation4 [shape = 's32[1]{0}', space=sflag, size = 0x4, scoped, tag = 'scoped memory for linear_external_forward.2']
    #allocation5 [shape = 'u8[4096]{0}', space=vmem, size = 0x1000, scoped, tag = 'input window, operand 1, single buffered']
    #allocation6 [shape = 's32[1]{0}', space=sflag, size = 0x4, scoped, tag = 'scoped memory for linear_external_forward.2']
    #allocation7 [shape = 'u8[4096]{0}', space=vmem, size = 0x1000, scoped, tag = 'output window, operand 0, single buffered']
    %7 = vsyncpa [#allocation3], 0
    %8 = vsyncpa [#allocation6], 0
    %9 = vsyncpa [#allocation4], 0
    // Predicated region
    $region2: #{linear_external_forward.2} parent=1 // pred_check
      _
    $region3: #{linear_external_forward.2} parent=1 // pred_check_branch
      %11 = sbr.rel (0) target = $region5
    $region4: #{linear_external_forward.2} parent=1 // pred_region
      %s13 = ssub.s32 128, 128
      %14 = vsyncadd [#allocation3], %s13
      %s15 = sshll.u32 [#allocation2], 4
      %s16 = int_to_ptr.vmem [resolvable:$true] %s15
      %21 = dma.hbm_to_vmem [thread:$0]  %s0, 128, %s16, [#allocation3], 64, 64, 4
    $region5: #{linear_external_forward.2} parent=1 // pred_fallthru
      _
    // Predicated region
    $region6: #{linear_external_forward.2} parent=1 // pred_check
      _
    $region7: #{linear_external_forward.2} parent=1 // pred_check_branch
      %23 = sbr.rel (0) target = $region9
    $region8: #{linear_external_forward.2} parent=1 // pred_region
      %s25 = ssub.s32 128, 128
      %26 = vsyncadd [#allocation6], %s25
      %s27 = sshll.u32 [#allocation5], 4
      %s28 = int_to_ptr.vmem [resolvable:$true] %s27
      %33 = dma.hbm_to_vmem [thread:$0]  %s1, 128, %s28, [#allocation6], 64, 64, 4
    $region9: #{linear_external_forward.2} parent=1 // pred_fallthru
      _
    // Predicated region
    $region10: #{linear_external_forward.2} parent=1 // pred_check
      _
    $region11: #{linear_external_forward.2} parent=1 // pred_check_branch
      %35 = sbr.rel (0) target = $region13
    $region12: #{linear_external_forward.2} parent=1 // pred_region
      %36 = dma.done [#allocation3], 128
    $region13: #{linear_external_forward.2} parent=1 // pred_fallthru
      _
    // Predicated region
    $region14: #{linear_external_forward.2} parent=1 // pred_check
      _
    $region15: #{linear_external_forward.2} parent=1 // pred_check_branch
      %38 = sbr.rel (0) target = $region17
    $region16: #{linear_external_forward.2} parent=1 // pred_region
      %39 = dma.done [#allocation6], 128
    $region17: #{linear_external_forward.2} parent=1 // pred_fallthru
      _
    %v41 = vld [vmem:[#allocation5] sm:$0xf]
    %v42 = vld [vmem:[#allocation5 + $0x4] sm:$0xf]
    %v43 = vld [vmem:[#allocation2] sm:$0xf]
    %v44 = vld [vmem:[#allocation2 + $0x4] sm:$0xf]
    %v47 = vunpack.c.l.b16 %v41
    %v48 = vunpack.c.l.b16 %v42
    %v49 = vpack.c.b16 %v48, %v47
    %v52 = vunpack.c.l.b16 %v43
    %v53 = vunpack.c.l.b16 %v44
    %v54 = vpack.c.b16 %v53, %v52
    %vm56 = vcmask 130048
    %v58 = vsel %vm56, %v49, 0
    %60 = vmatprep.subr.bf16.mxu0 0
    %61 = vmatpush1.bf16.msra.mxu0 %v54
    %62 = vmatprep.subr.bf16.mxu0 0
    %63 = vmatpush1.bf16.msra.mxu0 0
    %64 = vmatprep.subr.bf16.mxu0 0
    %65 = vmatpush1.bf16.msra.mxu0 0
    %66 = vmatprep.subr.bf16.mxu0 0
    %67 = vmatpush1.bf16.msra.mxu0 0
    %68 = vmatprep.subr.bf16.mxu0 0
    %69 = vmatpush1.bf16.msra.mxu0 0
    %70 = vmatprep.subr.bf16.mxu0 0
    %71 = vmatpush1.bf16.msra.mxu0 0
    %72 = vmatprep.subr.bf16.mxu0 0
    %73 = vmatpush1.bf16.msra.mxu0 0
    %74 = vmatprep.subr.bf16.mxu0 0
    %75 = vmatpush1.bf16.msra.mxu0 0
    %76 = vmatprep.subr.bf16.mxu0 0
    %77 = vmatpush1.bf16.msra.mxu0 0
    %78 = vmatprep.subr.bf16.mxu0 0
    %79 = vmatpush1.bf16.msra.mxu0 0
    %80 = vmatprep.subr.bf16.mxu0 0
    %81 = vmatpush1.bf16.msra.mxu0 0
    %82 = vmatprep.subr.bf16.mxu0 0
    %83 = vmatpush1.bf16.msra.mxu0 0
    %84 = vmatprep.subr.bf16.mxu0 0
    %85 = vmatpush1.bf16.msra.mxu0 0
    %86 = vmatprep.subr.bf16.mxu0 0
    %87 = vmatpush1.bf16.msra.mxu0 0
    %88 = vmatprep.subr.bf16.mxu0 0
    %89 = vmatpush1.bf16.msra.mxu0 0
    %90 = vmatprep.subr.bf16.mxu0 0
    %91 = vmatpush1.bf16.msra.mxu0 0
    %92 = vmatprep.mubr.bf16.mxu0 0
    %93 = vmatmul.mubr.bf16.gmra.mrb[0].mxu0 %v58
    %v94 = vpop.f32.mrb[0].mxu0
    %v95 = vadd.f32 0.0, %v94
    %v96 = vpop.f32.mrb[0].mxu0
    %v97 = vpop.f32.mrb[0].mxu0
    %v98 = vadd.f32 0.0, %v97
    %v99 = vpop.f32.mrb[0].mxu0
    %100 = vdwg.mxu0
    %v101 = vmul.f32 %v95, %v95
    %v102 = vmul.f32 %v98, %v98
    %v103 = vadd.f32 %v101, %v102
    %v104 = vmul.f32 %v103, %v95
    %v105 = vpack.c.bf16 %v104, %v104
    %vm106 = vcmask 125952
    %107 = vst.msk [vmem:[#allocation7] sm:$0xf] %vm106, %v105
    %v108 = vmul.f32 %v103, %v98
    %v109 = vpack.c.bf16 %v108, %v108
    %s110 = scalar_lea.vmem [#allocation7], 4
    %111 = vst.msk [vmem:[%s110] sm:$0xf] %vm106, %v109
    // Predicated region
    $region18: #{linear_external_forward.2} parent=1 // pred_check
      _
    $region19: #{linear_external_forward.2} parent=1 // pred_check_branch
      %113 = sbr.rel (0) target = $region21
    $region20: #{linear_external_forward.2} parent=1 // pred_region
      %s115 = ssub.s32 128, 128
      %116 = vsyncadd [#allocation4], %s115
      %s117 = sshll.u32 [#allocation7], 4
      %s118 = int_to_ptr.vmem [resolvable:$true] %s117
      %123 = dma.vmem_to_hbm [thread:$0]  %s118, 128, %s2, [#allocation4], 64, 64, 4
    $region21: #{linear_external_forward.2} parent=1 // pred_fallthru
      _
    // Predicated region
    $region22: #{linear_external_forward.2} parent=1 // pred_check
      _
    $region23: #{linear_external_forward.2} parent=1 // pred_check_branch
      %125 = sbr.rel (0) target = $region25
    $region24: #{linear_external_forward.2} parent=1 // pred_region
      %126 = dma.done [#allocation4], 128
    $region25: #{linear_external_forward.2} parent=1 // pred_fallthru
      _
    %127 = vsyncpa [#allocation3], 1
    %128 = vsyncpa [#allocation6], 1
    %129 = vsyncpa [#allocation4], 1

// kernel: linear_external_forward.3
$region0: #{linear_external_forward.3}
  #allocation0 [shape = 'u32[]', space=smem, size = 0x4, offset = 0x4, fixed_abs, tag = 'smem constant byte address 0x4 - core index']
  #allocation1 [shape = 'u32[144,128]{1,0:T(1,128)}', space=vmem, size = 0x12000, scoped, tag = 'internal scratch']
  %s0 = inlined_call_operand.hbm [shape: f32[4,16], index: 0, kind: input, shape index: {}]
  %s1 = inlined_call_operand.hbm [shape: f32[4,1], index: 1, kind: input, shape index: {}]
  %s2 = inlined_call_operand.hbm [shape: f32[4,1], index: 2, kind: input, shape index: {}]
  %s3 = inlined_call_operand.hbm [shape: f32[4,16], index: 3, kind: output, shape index: {}]
  %s4 = sld [smem:[#allocation0]]
  $region34: #{linear_external_forward.3} parent=0
    _
  %s6 = ssub.s32 1, %s4
  %s7 = scalar_select 0, %s6, %s4
  $region1: #{linear_external_forward.3} parent=0
    #allocation2 [shape = 'u8[2048]{0}', space=vmem, size = 0x800, scoped, tag = 'input window, operand 0, single buffered']
    #allocation3 [shape = 's32[1]{0}', space=sflag, size = 0x4, scoped, tag = 'scoped memory for linear_external_forward.3']
    #allocation4 [shape = 's32[1]{0}', space=sflag, size = 0x4, scoped, tag = 'scoped memory for linear_external_forward.3']
    #allocation5 [shape = 'u8[2048]{0}', space=vmem, size = 0x800, scoped, tag = 'input window, operand 1, single buffered']
    #allocation6 [shape = 's32[1]{0}', space=sflag, size = 0x4, scoped, tag = 'scoped memory for linear_external_forward.3']
    #allocation7 [shape = 'u8[2048]{0}', space=vmem, size = 0x800, scoped, tag = 'input window, operand 2, single buffered']
    #allocation8 [shape = 'u8[2048]{0}', space=vmem, size = 0x800, scoped, tag = 'output window, operand 0, single buffered']
    %8 = vsyncpa [#allocation3], 0
    %9 = vsyncpa [#allocation6], 0
    %10 = vsyncpa [#allocation4], 0
    // Predicated region
    $region2: #{linear_external_forward.3} parent=1 // pred_check
      _
    $region3: #{linear_external_forward.3} parent=1 // pred_check_branch
      %12 = sbr.rel (0) target = $region5
    $region4: #{linear_external_forward.3} parent=1 // pred_region
      %s14 = ssub.s32 64, 64
      %15 = vsyncadd [#allocation3], %s14
      %s17 = sshll.u32 [#allocation2], 4
      %s18 = int_to_ptr.vmem [resolvable:$true] %s17
      %20 = dma.hbm_to_vmem [thread:$0]  %s0, 64, %s18, [#allocation3]
    $region5: #{linear_external_forward.3} parent=1 // pred_fallthru
      _
    // Predicated region
    $region6: #{linear_external_forward.3} parent=1 // pred_check
      _
    $region7: #{linear_external_forward.3} parent=1 // pred_check_branch
      %22 = sbr.rel (0) target = $region9
    $region8: #{linear_external_forward.3} parent=1 // pred_region
      %s24 = ssub.s32 64, 64
      %25 = vsyncadd [#allocation6], %s24
      %s27 = sshll.u32 [#allocation5], 4
      %s28 = int_to_ptr.vmem [resolvable:$true] %s27
      %30 = dma.hbm_to_vmem [thread:$0]  %s1, 64, %s28, [#allocation6]
    $region9: #{linear_external_forward.3} parent=1 // pred_fallthru
      _
    // Predicated region
    $region10: #{linear_external_forward.3} parent=1 // pred_check
      _
    $region11: #{linear_external_forward.3} parent=1 // pred_check_branch
      %32 = sbr.rel (0) target = $region13
    $region12: #{linear_external_forward.3} parent=1 // pred_region
      %s34 = ssub.s32 64, 64
      %35 = vsyncadd [#allocation6], %s34
      %s37 = sshll.u32 [#allocation7], 4
      %s38 = int_to_ptr.vmem [resolvable:$true] %s37
      %40 = dma.hbm_to_vmem [thread:$0]  %s2, 64, %s38, [#allocation6]
    $region13: #{linear_external_forward.3} parent=1 // pred_fallthru
      _
    // Predicated region
    $region14: #{linear_external_forward.3} parent=1 // pred_check
      _
    $region15: #{linear_external_forward.3} parent=1 // pred_check_branch
      %42 = sbr.rel (0) target = $region17
    $region16: #{linear_external_forward.3} parent=1 // pred_region
      %43 = dma.done [#allocation3], 64
    $region17: #{linear_external_forward.3} parent=1 // pred_fallthru
      _
    // Predicated region
    $region18: #{linear_external_forward.3} parent=1 // pred_check
      _
    $region19: #{linear_external_forward.3} parent=1 // pred_check_branch
      %45 = sbr.rel (0) target = $region21
    $region20: #{linear_external_forward.3} parent=1 // pred_region
      %46 = dma.done [#allocation6], 64
    $region21: #{linear_external_forward.3} parent=1 // pred_fallthru
      _
    // Predicated region
    $region22: #{linear_external_forward.3} parent=1 // pred_check
      _
    $region23: #{linear_external_forward.3} parent=1 // pred_check_branch
      %48 = sbr.rel (0) target = $region25
    $region24: #{linear_external_forward.3} parent=1 // pred_region
      %49 = dma.done [#allocation6], 64
    $region25: #{linear_external_forward.3} parent=1 // pred_fallthru
      _
    %v50 = vld [vmem:[#allocation2] sm:$0xf]
    %vm51 = vcmask 125952
    %v52 = vsel %vm51, %v50, 0.0
    %53 = vadd.xlane.f32.xlu0 %v52
    %v54 = vpop.xlane.xlu0 %53
    %v55 = vmul.f32 %v54, 0.0625
    %v56 = vsub.f32 %v50, %v55
    %v57 = vmul.f32 %v56, %v56
    %v58 = vsel %vm51, %v57, 0.0
    %59 = vadd.xlane.f32.xlu0 %v58
    %v60 = vpop.xlane.xlu0 %59
    %v61 = vmul.f32 %v60, 0.0625
    %v62 = vadd.f32 %v61, 1e-05
    %v63 = vrsqrt.pop %v62
    %v64 = vld [vmem:[#allocation5] sm:$0xf]
    %v65 = vmul.f32 %v63, %v64
    %67 = vset.pattern.permute.xlu0 0
    %68 = vperm.xlu0 %67, %v65
    %v69 = vpop.permute.xlu0 %68
    %v71 = vmul.f32 %v56, %v69
    %v72 = vld [vmem:[#allocation7] sm:$0xf]
    %74 = vset.pattern.permute.xlu0 0
    %75 = vperm.xlu0 %74, %v72
    %v76 = vpop.permute.xlu0 %75
    %v78 = vadd.f32 %v71, %v76
    %79 = vst.msk [vmem:[#allocation8] sm:$0xf] %vm51, %v78
    // Predicated region
    $region26: #{linear_external_forward.3} parent=1 // pred_check
      _
    $region27: #{linear_external_forward.3} parent=1 // pred_check_branch
      %81 = sbr.rel (0) target = $region29
    $region28: #{linear_external_forward.3} parent=1 // pred_region
      %s83 = ssub.s32 64, 64
      %84 = vsyncadd [#allocation4], %s83
      %s86 = sshll.u32 [#allocation8], 4
      %s87 = int_to_ptr.vmem [resolvable:$true] %s86
      %89 = dma.vmem_to_hbm [thread:$0]  %s87, 64, %s3, [#allocation4]
    $region29: #{linear_external_forward.3} parent=1 // pred_fallthru
      _
    // Predicated region
    $region30: #{linear_external_forward.3} parent=1 // pred_check
      _
    $region31: #{linear_external_forward.3} parent=1 // pred_check_branch
      %91 = sbr.rel (0) target = $region33
    $region32: #{linear_external_forward.3} parent=1 // pred_region
      %92 = dma.done [#allocation4], 64
    $region33: #{linear_external_forward.3} parent=1 // pred_fallthru
      _
    %93 = vsyncpa [#allocation3], 1
    %94 = vsyncpa [#allocation6], 1
    %95 = vsyncpa [#allocation4], 1

</llo_original>
